<compile_context>
chip_gen: v5e
topology: v5e:2x2
jax: 0.10.0
libtpu: 0.0.40
codegen_flags: <defaults>
</compile_context>

<pallas_src>
import functools

import jax
import jax.numpy as jnp
from jax.experimental import pallas as pl
from jax.experimental.pallas import tpu as pltpu


def _round_up(x, m):
    return (x + m - 1) // m * m


def _device_kind():
    try:
        return jax.devices()[0].device_kind.lower()
    except Exception:
        return ""


def _use_int8_mxu(kind):
    # v5e/v5p/v6e have a native int8 MXU path; v7x (and older gens, to be safe)
    # use the bf16 path instead.  No try/except masking of real compile errors.
    return ("v5" in kind) or ("v6" in kind)


def _pick_tile(total, cap, align):
    """Largest multiple of `align` that is <= cap and divides `total`;
    falls back to keeping the whole dimension resident if nothing divides."""
    if total <= cap:
        return total
    t = (cap // align) * align
    while t >= align:
        if total % t == 0:
            return t
        t -= align
    return total


# ----------------------------------------------------------------------------
# Init-time weight quantization / layout prep (Int8Params equivalent)
# ----------------------------------------------------------------------------

def quantize_weight_int8(w):
    """bitsandbytes vectorwise int8 quantization (per output row).

    w: [out_features, in_features] float. Returns (cbT [in,out] int8, scb [out] f32).
    """
    absmax = jnp.max(jnp.abs(w), axis=1)
    safe = jnp.where(absmax > 0.0, absmax, 1.0)
    cb = jnp.clip(jnp.rint(w * (127.0 / safe[:, None])), -127, 127).astype(jnp.int8)
    return cb.T, absmax.astype(jnp.float32)


def prepare_linear8bitlt_params(w_fp, bias=None, *, k_align=512, n_align=128):
    """One-time prep: quantize, transpose to [K, N], PAD weight/SCB/bias, and fold
    the 1/127^2 dequant constant into SCB, so the forward never materializes an
    HBM copy of the weight."""
    cbT, scb = quantize_weight_int8(w_fp)
    K, N = cbT.shape
    Np = _round_up(N, n_align)
    Kp = K if K <= k_align else _round_up(K, k_align)
    if (Kp, Np) != (K, N):
        cbT = jnp.pad(cbT, ((0, Kp - K), (0, Np - N)))
    scb_pre = (scb * (1.0 / (127.0 * 127.0))).reshape(1, N)
    if Np != N:
        scb_pre = jnp.pad(scb_pre, ((0, 0), (0, Np - N)))
    bias_p = None
    if bias is not None:
        bias_p = bias.astype(jnp.float32).reshape(1, N)
        if Np != N:
            bias_p = jnp.pad(bias_p, ((0, 0), (0, Np - N)))
    return {
        "cbT": cbT,          # int8 [Kp, Np]
        "scb": scb_pre,      # f32  [1, Np], already * 1/127^2
        "bias": bias_p,      # f32  [1, Np] or None
        "in_features": K,
        "out_features": N,
    }


# ----------------------------------------------------------------------------
# Kernels
# ----------------------------------------------------------------------------

def _act_quant_kernel(x_ref, xq_ref, scale_ref):
    """Per-row dynamic activation quantization: int8 codes + f32 absmax scale."""
    x = x_ref[...].astype(jnp.float32)
    absmax = jnp.max(jnp.abs(x), axis=-1, keepdims=True)      # [tm, 1]
    safe = jnp.where(absmax > 0.0, absmax, 1.0)
    xq = jnp.clip(jnp.rint(x * (127.0 / safe)), -127.0, 127.0)
    xq_ref[...] = xq.astype(jnp.int8)
    scale_ref[...] = absmax


def _matmul_kernel(*refs, has_bias: bool, use_int8: bool):
    # refs: xq [tm, tk] int8, w [tk, tn] int8, scale [tm, 1] f32,
    #       scb [1, tn] f32 (pre-scaled by 1/127^2), [bias [1, tn] f32],
    #       o [tm, tn], acc scratch [tm, tn] (int32 or f32).
    if has_bias:
        xq_ref, w_ref, scale_ref, scb_ref, bias_ref, o_ref, acc_ref = refs
    else:
        xq_ref, w_ref, scale_ref, scb_ref, o_ref, acc_ref = refs
        bias_ref = None

    k = pl.program_id(2)

    @pl.when(k == 0)
    def _():
        acc_ref[...] = jnp.zeros_like(acc_ref)

    if use_int8:
        # int8 x int8 -> int32 on the MXU (exact integer accumulation).
        acc_ref[...] += jnp.dot(xq_ref[...], w_ref[...],
                                preferred_element_type=jnp.int32)
    else:
        # bf16 path (v7x / older gens): ints |v|<=127 are exact in bf16; casts are
        # per-K-tile so the bf16 temps stay small (feeds v7x's 64 MiB VMEM budget).
        acc_ref[...] += jnp.dot(xq_ref[...].astype(jnp.bfloat16),
                                w_ref[...].astype(jnp.bfloat16),
                                preferred_element_type=jnp.float32)

    @pl.when(k == pl.num_programs(2) - 1)
    def _():
        # Dequantize: scb already carries the 1/127^2 factor.
        out = acc_ref[...].astype(jnp.float32) * (scale_ref[...] * scb_ref[...])
        if has_bias:
            out = out + bias_ref[...]
        o_ref[...] = out.astype(o_ref.dtype)


# ----------------------------------------------------------------------------
# Forward
# ----------------------------------------------------------------------------

def linear8bitlt(x, params, *, block_m=None, block_n=None, block_k=None,
                 force_bf16=False, stream_dtype=None):
    """Forward of Linear8bitLt (threshold=0.0, has_fp16_weights=False).

    x:      [..., K] activations (f32 / bf16 / f16).
    params: dict from prepare_linear8bitlt_params (padded int8 weight, scb, bias).
    """
    K = params["in_features"]
    N = params["out_features"]
    cbT, scb, bias = params["cbT"], params["scb"], params["bias"]
    Kp, Np = cbT.shape

    orig_shape = x.shape
    assert orig_shape[-1] == K, "last dim of x must equal in_features"
    x2d = x.reshape(-1, K)
    M = x2d.shape[0]
    out_dtype = x.dtype

    kind = _device_kind()
    use_int8 = (not force_bf16) and _use_int8_mxu(kind)

    # Per-generation tile defaults.
    if "v7" in kind or "7x" in kind:
        dm, dn, dk = 256, 256, 1024      # 64 MiB VMEM, compute-bound at 256
    elif "v6" in kind:
        dm, dn, dk = 512, 256, 2048      # weight-DMA bound at tm=256 -> raise tm
    else:
        dm, dn, dk = 256, 256, 2048      # v5e/v5p/v4 default
    block_m = dm if block_m is None else block_m
    block_n = dn if block_n is None else block_n
    block_k = dk if block_k is None else block_k

    tm = min(block_m, _round_up(M, 8))
    tn = _pick_tile(Np, block_n, 128)
    tk = _pick_tile(Kp, block_k, 128)
    m_pad = _round_up(M, tm)

    # Stream activations narrow (bf16 for f32 inputs); quant math stays f32 in-kernel.
    if stream_dtype is None:
        stream_dtype = x.dtype if jnp.dtype(x.dtype).itemsize <= 2 else jnp.bfloat16
    xs = x2d.astype(stream_dtype)
    if m_pad != M or Kp != K:
        xs = jnp.pad(xs, ((0, m_pad - M), (0, Kp - K)))
    xbytes = jnp.dtype(stream_dtype).itemsize

    # ---------- pass 1: activation quantization (grid over M tiles only) ----------
    tm_q = 256 if (tm > 256 and tm % 256 == 0) else tm
    q_vmem = int(2 * (tm_q * Kp * (xbytes + 1) + tm_q * 4) * 1.3) + (1 << 20)
    xq, scale = pl.pallas_call(
        _act_quant_kernel,
        out_shape=(jax.ShapeDtypeStruct((m_pad, Kp), jnp.int8),
                   jax.ShapeDtypeStruct((m_pad, 1), jnp.float32)),
        grid_spec=pltpu.PrefetchScalarGridSpec(
            num_scalar_prefetch=0,
            grid=(m_pad // tm_q,),
            in_specs=[pl.BlockSpec((tm_q, Kp), lambda i: (i, 0))],
            out_specs=(pl.BlockSpec((tm_q, Kp), lambda i: (i, 0)),
                       pl.BlockSpec((tm_q, 1), lambda i: (i, 0))),
        ),
        compiler_params=pltpu.CompilerParams(
            dimension_semantics=("parallel",),
            vmem_limit_bytes=min(q_vmem, 128 << 20),
        ),
    )(xs)

    # ---------- pass 2: int8 matmul + dequant (grid (M, N, K), K innermost) ----------
    has_bias = bias is not None
    args = [xq, cbT, scale, scb]
    in_specs = [
        pl.BlockSpec((tm, tk), lambda i, j, k: (i, k)),   # int8 activations
        pl.BlockSpec((tk, tn), lambda i, j, k: (k, j)),   # int8 weight
        pl.BlockSpec((tm, 1), lambda i, j, k: (i, 0)),    # per-row activation absmax
        pl.BlockSpec((1, tn), lambda i, j, k: (0, j)),    # pre-scaled SCB
    ]
    if has_bias:
        args.append(bias)
        in_specs.append(pl.BlockSpec((1, tn), lambda i, j, k: (0, j)))

    out_bytes = jnp.dtype(out_dtype).itemsize
    cast_tmp = 0 if use_int8 else 2 * (tm * tk + tk * tn)   # bf16 cast temps per step
    per_buf = (tm * tk + tk * tn + tm * 4 + tn * 4
               + (tn * 4 if has_bias else 0) + tm * tn * out_bytes)
    mm_vmem = int((2 * per_buf + tm * tn * 4 + cast_tmp) * 1.25) + (2 << 20)

    kernel = functools.partial(_matmul_kernel, has_bias=has_bias, use_int8=use_int8)
    acc_dtype = jnp.int32 if use_int8 else jnp.float32

    out = pl.pallas_call(
        kernel,
        out_shape=jax.ShapeDtypeStruct((m_pad, Np), out_dtype),
        grid_spec=pltpu.PrefetchScalarGridSpec(
            num_scalar_prefetch=0,
            grid=(m_pad // tm, Np // tn, Kp // tk),
            in_specs=in_specs,
            out_specs=pl.BlockSpec((tm, tn), lambda i, j, k: (i, j)),
            scratch_shapes=[pltpu.VMEM((tm, tn), acc_dtype)],
        ),
        compiler_params=pltpu.CompilerParams(
            # No cross-j carry (quantization is a pre-pass) -> both M and N axes are
            # megacore-shardable; K is the reduction axis (accumulator carry).
            dimension_semantics=("parallel", "parallel", "arbitrary"),
            vmem_limit_bytes=min(mm_vmem, 128 << 20),
        ),
    )(*args)

    out = out[:M, :N]
    return out.reshape(orig_shape[:-1] + (N,))


# ----------------------------------------------------------------------------
# Pure-JAX reference (LLM.int8() forward, threshold=0.0) for correctness checks
# ----------------------------------------------------------------------------

def _reference(x, cbT, scb, bias):
    K = x.shape[-1]
    x2d = x.reshape(-1, K).astype(jnp.float32)
    absmax = jnp.max(jnp.abs(x2d), axis=-1, keepdims=True)
    safe = jnp.where(absmax > 0.0, absmax, 1.0)
    xq = jnp.clip(jnp.rint(x2d * (127.0 / safe)), -127.0, 127.0)
    acc = jnp.dot(xq, cbT.astype(jnp.float32), precision=jax.lax.Precision.HIGHEST)
    out = acc * (absmax * scb[None, :].astype(jnp.float32)) / (127.0 * 127.0)
    if bias is not None:
        out = out + bias[None, :].astype(jnp.float32)
    return out.reshape(x.shape[:-1] + (cbT.shape[1],)).astype(x.dtype)


if __name__ == "__main__":
    key = jax.random.PRNGKey(0)
    k_x, k_w, k_b, k_w2, k_x2 = jax.random.split(key, 5)

    batch, seq, hidden, out_features = 2, 8, 32, 64

    # bf16 activations (matches the fp16/bf16 serving path & narrow streaming).
    x = jax.random.normal(k_x, (batch, seq, hidden), dtype=jnp.float32).astype(jnp.bfloat16)

    w_fp = jax.random.normal(k_w, (out_features, hidden), dtype=jnp.float32) * 0.05
    bias = jax.random.normal(k_b, (out_features,), dtype=jnp.float32) * 0.01

    params = prepare_linear8bitlt_params(w_fp, bias)        # init-time, padded
    cbT_raw, scb_raw = quantize_weight_int8(w_fp)            # unpadded, for reference

    # 1) bias path (single-tile grid).
    out = jax.block_until_ready(linear8bitlt(x, params))
    ref = _reference(x, cbT_raw, scb_raw, bias)
    assert out.shape == (batch, seq, out_features)
    assert out.dtype == x.dtype
    assert jnp.allclose(out.astype(jnp.float32), ref.astype(jnp.float32),
                        atol=2e-2, rtol=2e-2), "mismatch vs reference (bias path)"

    # 2) no-bias path + f32 activations (exercises the f32 -> bf16 activation
    #    streaming downcast; x was built from bf16 so the downcast is lossless
    #    and the f32 reference matches).
    params_nb = prepare_linear8bitlt_params(w_fp, None)
    x32 = x.astype(jnp.float32)
    out_nb = jax.block_until_ready(linear8bitlt(x32, params_nb))
    ref_nb = _reference(x32, cbT_raw, scb_raw, None)
    assert out_nb.dtype == jnp.float32
    assert jnp.allclose(out_nb, ref_nb, atol=1e-4, rtol=1e-4), \
        "mismatch vs reference (no-bias / f32 path)"

    # 3) multi-tile grid (2,2,2): exercises the K-axis accumulator init/finalize,
    #    the N tiling, and the parallel M/N axes.
    hidden2, out_features2 = 256, 256
    x2 = jax.random.normal(k_x2, (batch, seq, hidden2),
                           dtype=jnp.float32).astype(jnp.bfloat16)
    w_fp2 = jax.random.normal(k_w2, (out_features2, hidden2), dtype=jnp.float32) * 0.05
    params2 = prepare_linear8bitlt_params(w_fp2, None)
    cbT2_raw, scb2_raw = quantize_weight_int8(w_fp2)
    out2 = jax.block_until_ready(
        linear8bitlt(x2, params2, block_m=8, block_n=128, block_k=128))
    ref2 = _reference(x2, cbT2_raw, scb2_raw, None)
    assert out2.shape == (batch, seq, out_features2)
    assert jnp.allclose(out2.astype(jnp.float32), ref2.astype(jnp.float32),
                        atol=2e-2, rtol=2e-2), "mismatch vs reference (tiled)"

    # TODO(synk): threshold > 0 mixed-precision outlier decomposition (outlier-column
    # extraction + fp16 side-matmul) is not implemented; this module uses threshold=0.0.
    print("KERNEL_OK")
</pallas_src>

<mosaic_0001>
module attributes {stable_mosaic.version = 11 : i64} {
  func.func @_act_quant_kernel(%arg0: i32, %arg1: memref<16x32xbf16, #tpu.memory_space<vmem>>, %arg2: memref<16x32xi8, #tpu.memory_space<vmem>>, %arg3: memref<16x1xf32, #tpu.memory_space<vmem>>) attributes {dimension_semantics = [#tpu.dimension_semantics<parallel>], iteration_bounds = array<i64: 1>, scalar_prefetch = 0 : i64, scratch_operands = 0 : i64, tpu.core_type = #tpu.core_type<tc>, window_params = [{transform_indices = @transform_0, window_bounds = array<i64: 16, 32>}, {transform_indices = @transform_1, window_bounds = array<i64: 16, 32>}, {transform_indices = @transform_2, window_bounds = array<i64: 16, 1>}]} {
    %c0 = arith.constant 0 : index
    %c0_0 = arith.constant 0 : index
    %0 = vector.load %arg1[%c0, %c0_0] : memref<16x32xbf16, #tpu.memory_space<vmem>>, vector<16x32xbf16>
    %1 = arith.extf %0 : vector<16x32xbf16> to vector<16x32xf32>
    %2 = math.absf %1 : vector<16x32xf32>
    %cst = arith.constant dense<0xFF800000> : vector<16xf32>
    %3 = vector.multi_reduction <maximumf>, %2, %cst [1] : vector<16x32xf32> to vector<16xf32>
    %4 = vector.shape_cast %3 : vector<16xf32> to vector<16x1xf32>
    %cst_1 = arith.constant 0.000000e+00 : f32
    %5 = vector.broadcast %cst_1 : f32 to vector<16x1xf32>
    %6 = arith.cmpf ogt, %4, %5 : vector<16x1xf32>
    %cst_2 = arith.constant 1.000000e+00 : f32
    %7 = vector.broadcast %cst_2 : f32 to vector<16x1xf32>
    %8 = arith.select %6, %4, %7 : vector<16x1xi1>, vector<16x1xf32>
    %cst_3 = arith.constant 1.270000e+02 : f32
    %9 = vector.broadcast %cst_3 : f32 to vector<16x1xf32>
    %10 = arith.divf %9, %8 : vector<16x1xf32>
    %11 = vector.broadcast %10 : vector<16x1xf32> to vector<16x32xf32>
    %12 = arith.mulf %1, %11 : vector<16x32xf32>
    %13 = math.roundeven %12 : vector<16x32xf32>
    %cst_4 = arith.constant -1.270000e+02 : f32
    %cst_5 = arith.constant 1.270000e+02 : f32
    %14 = vector.broadcast %cst_4 : f32 to vector<16x32xf32>
    %15 = arith.maximumf %14, %13 : vector<16x32xf32>
    %16 = vector.broadcast %cst_5 : f32 to vector<16x32xf32>
    %17 = arith.minimumf %16, %15 : vector<16x32xf32>
    %18 = arith.fptosi %17 : vector<16x32xf32> to vector<16x32xi8>
    %c0_6 = arith.constant 0 : index
    %c0_7 = arith.constant 0 : index
    %19 = vector.load %arg2[%c0_6, %c0_7] : memref<16x32xi8, #tpu.memory_space<vmem>>, vector<16x32xi8>
    tpu.vector_store %arg2[%c0_6, %c0_7], %18 {strides = array<i32>} : memref<16x32xi8, #tpu.memory_space<vmem>>, vector<16x32xi8>,
    %c0_8 = arith.constant 0 : index
    %c0_9 = arith.constant 0 : index
    %20 = vector.load %arg3[%c0_8, %c0_9] : memref<16x1xf32, #tpu.memory_space<vmem>>, vector<16x1xf32>
    tpu.vector_store %arg3[%c0_8, %c0_9], %4 {strides = array<i32>} : memref<16x1xf32, #tpu.memory_space<vmem>>, vector<16x1xf32>,
    return
  }
  func.func @transform_0(%arg0: i32) -> (i32, i32) {
    %c0_i32 = arith.constant 0 : i32
    %c0_i32_0 = arith.constant 0 : i32
    return %arg0, %c0_i32 : i32, i32
  }
  func.func @transform_1(%arg0: i32) -> (i32, i32) {
    %c0_i32 = arith.constant 0 : i32
    %c0_i32_0 = arith.constant 0 : i32
    return %arg0, %c0_i32 : i32, i32
  }
  func.func @transform_2(%arg0: i32) -> (i32, i32) {
    %c0_i32 = arith.constant 0 : i32
    %c0_i32_0 = arith.constant 0 : i32
    return %arg0, %c0_i32 : i32, i32
  }
}

</mosaic_0001>

<llo_original>
// kernel: tpu_custom_call.1
$region0: #{tpu_custom_call.1}
  #allocation0 [shape = 'u32[]', space=smem, size = 0x4, offset = 0x4, fixed_abs, tag = 'smem constant byte address 0x4 - core index']
  #allocation1 [shape = 'u32[72,128]{1,0:T(1,128)}', space=vmem, size = 0x9000, scoped, tag = 'internal scratch']
  %s0 = inlined_call_operand.hbm [shape: bf16[16,32], index: 0, kind: input, shape index: {}]
  %s1 = inlined_call_operand.hbm [shape: s8[16,32], index: 1, kind: output, shape index: {0}]
  %s2 = inlined_call_operand.vmem [shape: f32[16,1], index: 2, kind: output, shape index: {1}]
  %3 = xla_tuple %s1, %s2
  %s4 = sld [smem:[#allocation0]]
  $region26: #{tpu_custom_call.1} parent=0
    _
  %s6 = ssub.s32 1, %s4
  %s7 = scalar_select 0, %s6, %s4
  $region1: #{tpu_custom_call.1} parent=0
    #allocation2 [shape = 'u8[4096]{0}', space=vmem, size = 0x1000, scoped, tag = 'input window, operand 0, single buffered']
    #allocation3 [shape = 's32[1]{0}', space=sflag, size = 0x4, scoped, tag = 'scoped memory for tpu_custom_call.1']
    #allocation4 [shape = 's32[1]{0}', space=sflag, size = 0x4, scoped, tag = 'scoped memory for tpu_custom_call.1']
    #allocation5 [shape = 'u8[2048]{0}', space=vmem, size = 0x800, scoped, tag = 'output window, operand 0, single buffered']
    %8 = vsyncpa [#allocation3], 0
    %9 = vsyncpa [#allocation4], 0
    // Predicated region
    $region2: #{tpu_custom_call.1} parent=1 // pred_check
      _
    $region3: #{tpu_custom_call.1} parent=1 // pred_check_branch
      %11 = sbr.rel (0) target = $region5
    $region4: #{tpu_custom_call.1} parent=1 // pred_region
      %13 = vsyncadd [#allocation3], 0
      %s14 = sshll.u32 %s0, 4
      %s15 = int_to_ptr.hbm [resolvable:$true] %s14
      %s16 = sshll.u32 [#allocation2], 4
      %s17 = int_to_ptr.vmem [resolvable:$true] %s16
      %22 = dma.hbm_to_vmem [thread:$0]  %s15, 128, %s17, [#allocation3], 64, 64, 4
    $region5: #{tpu_custom_call.1} parent=1 // pred_fallthru
      _
    // Predicated region
    $region6: #{tpu_custom_call.1} parent=1 // pred_check
      _
    $region7: #{tpu_custom_call.1} parent=1 // pred_check_branch
      %24 = sbr.rel (0) target = $region9
    $region8: #{tpu_custom_call.1} parent=1 // pred_region
      %26 = dma.done [#allocation3], 128
    $region9: #{tpu_custom_call.1} parent=1 // pred_fallthru
      _
    %v27 = vld [vmem:[#allocation2] sm:$0xf]
    %v28 = vld [vmem:[#allocation2 + $0x4] sm:$0xf]
    %v29 = vunpack.c.l.bf16 %v27
    %v30 = vunpack.c.l.bf16 %v28
    %v31 = vand.u32 2147483647, %v29
    %v32 = vand.u32 2147483647, %v30
    %vm33 = vcmask 261120
    %v34 = vsel %vm33, %v31, -inf
    %35 = vmax.xlane.f32.xlu0 %v34
    %v36 = vpop.xlane.xlu0 %35
    %v37 = vsel %vm33, %v32, -inf
    %38 = vmax.xlane.f32.xlu0 %v37
    %v39 = vpop.xlane.xlu0 %38
    %vm40 = vcmp.gt.f32.partialorder %v36, 0.0
    %vm41 = vcmp.gt.f32.partialorder %v39, 0.0
    %v42 = vsel %vm40, %v36, 1.0
    %v43 = vsel %vm41, %v39, 1.0
    %v44 = vrcp.pop %v42
    %v45 = vmul.f32 %v42, %v44
    %v46 = vsub.f32 1.0, %v45
    %v47 = vmul.f32 %v44, %v46
    %v48 = vadd.f32 %v44, %v47
    %vm49 = vweird.f32 %v42
    %vm50 = vweird.f32 %v44
    %vm51 = vmor %vm49, %vm50
    %v52 = vsel %vm51, %v44, %v48
    %v53 = vand.u32 2147483647, %v42
    %vm54 = vcmp.eq.f32.partialorder %v53, 8.507059e+37
    %v55 = vand.u32 %v42, 2147483648
    %v56 = vor.u32 1.1754944e-38, %v55
    %v57 = vsel %vm54, %v56, %v52
    %v58 = vmul.f32 127.0, %v57
    %v59 = vrcp.pop %v43
    %v60 = vmul.f32 %v43, %v59
    %v61 = vsub.f32 1.0, %v60
    %v62 = vmul.f32 %v59, %v61
    %v63 = vadd.f32 %v59, %v62
    %vm64 = vweird.f32 %v43
    %vm65 = vweird.f32 %v59
    %vm66 = vmor %vm64, %vm65
    %v67 = vsel %vm66, %v59, %v63
    %v68 = vand.u32 2147483647, %v43
    %vm69 = vcmp.eq.f32.partialorder %v68, 8.507059e+37
    %v70 = vand.u32 %v43, 2147483648
    %v71 = vor.u32 1.1754944e-38, %v70
    %v72 = vsel %vm69, %v71, %v67
    %v73 = vmul.f32 127.0, %v72
    %v74 = vmul.f32 %v29, %v58
    %v75 = vmul.f32 %v30, %v73
    %v76 = vround.ne.pseudo %v74
    %v77 = vround.ne.pseudo %v75
    %v78 = vmax.f32 %v76, -127.0
    %v79 = vmax.f32 %v77, -127.0
    %v80 = vmin.f32 %v78, 127.0
    %v81 = vmin.f32 %v79, 127.0
    %v82 = vmax.f32 %v80, -128.0
    %v83 = vmax.f32 %v81, -128.0
    %v84 = vmin.f32 %v82, 127.0
    %v85 = vmin.f32 %v83, 127.0
    %v86 = vcvt.f32.s32.to.zero.pseudo %v84
    %v87 = vcvt.f32.s32.to.zero.pseudo %v85
    %v88 = vpack.c.b16 %v86, %v86
    %v89 = vpack.c.b8 %v88, %v88
    %v90 = vpack.c.b16 %v87, %v87
    %v91 = vpack.c.b8 %v90, %v90
    %vm92 = vcmask 254976
    %93 = vst.msk [vmem:[#allocation5] sm:$0x3] %vm92, %v89
    %94 = vst.msk [vmem:[#allocation5 + $0x2] sm:$0x3] %vm92, %v91
    %vm95 = vcmask 7168
    %96 = vst.msk [vmem:[%s2] sm:$0xff] %vm95, %v36
    %97 = vst.msk [vmem:[%s2 + $0x8] sm:$0xff] %vm95, %v39
    // Predicated region
    $region10: #{tpu_custom_call.1} parent=1 // pred_check
      _
    $region11: #{tpu_custom_call.1} parent=1 // pred_check_branch
      %99 = sbr.rel (0) target = $region13
    $region12: #{tpu_custom_call.1} parent=1 // pred_region
      %101 = vsyncadd [#allocation4], 0
      %s102 = sshll.u32 [#allocation5], 4
      %s103 = int_to_ptr.vmem [resolvable:$true] %s102
      %s104 = sshll.u32 %s1, 4
      %s105 = int_to_ptr.hbm [resolvable:$true] %s104
      %110 = dma.vmem_to_hbm [thread:$0]  %s103, 64, %s105, [#allocation4], 32, 32, 2
    $region13: #{tpu_custom_call.1} parent=1 // pred_fallthru
      _
    // Predicated region
    $region14: #{tpu_custom_call.1} parent=1 // pred_check
      _
    $region15: #{tpu_custom_call.1} parent=1 // pred_check_branch
      %112 = sbr.rel (0) target = $region17
    $region16: #{tpu_custom_call.1} parent=1 // pred_region
      _
    $region17: #{tpu_custom_call.1} parent=1 // pred_fallthru
      _
    // Predicated region
    $region18: #{tpu_custom_call.1} parent=1 // pred_check
      _
    $region19: #{tpu_custom_call.1} parent=1 // pred_check_branch
      %114 = sbr.rel (0) target = $region21
    $region20: #{tpu_custom_call.1} parent=1 // pred_region
      %116 = dma.done [#allocation4], 64
    $region21: #{tpu_custom_call.1} parent=1 // pred_fallthru
      _
    // Predicated region
    $region22: #{tpu_custom_call.1} parent=1 // pred_check
      _
    $region23: #{tpu_custom_call.1} parent=1 // pred_check_branch
      %118 = sbr.rel (0) target = $region25
    $region24: #{tpu_custom_call.1} parent=1 // pred_region
      _
    $region25: #{tpu_custom_call.1} parent=1 // pred_fallthru
      _
    %119 = vsyncpa [#allocation3], 1
    %120 = vsyncpa [#allocation4], 1

</llo_original>
